<compile_context>
chip_gen: v7x
topology: tpu7x:2x2x1
jax: 0.10.0
libtpu: 0.0.40
codegen_flags: <defaults>
</compile_context>

<pallas_src>
import functools

import jax
import jax.numpy as jnp
import numpy as np
from jax.experimental import pallas as pl
from jax.experimental.pallas import tpu as pltpu


_F16_MIN_NORMAL_BITS = 0x38800000   # f32 bits of 2^-14 (smallest f16 normal)
_F16_OVERFLOW_BITS = 0x477FF000     # f32 bits of 65520. (smallest |x| -> f16 inf)
_F32_INF_BITS = 0x7F800000


def _fp16_round_trip_f32(x):
    """Bit-exact f32 -> f16 (RNE) -> f32 round trip via f32/int32 bit math."""
    bits = pltpu.bitcast(x, jnp.int32)
    a = bits & jnp.int32(0x7FFFFFFF)          # |x| bits
    sign = bits ^ a                            # isolated sign bit

    # Normal f16 range: RNE-drop 13 mantissa bits (the integer add carries into
    # the exponent automatically when the mantissa rounds up/overflows).
    lsb = (a >> 13) & jnp.int32(1)
    rnd = (a + (jnp.int32(0x0FFF) + lsb)) & jnp.int32(~0x1FFF)

    # Subnormal f16 range (|x| < 2^-14): RNE-quantise to multiples of 2^-24.
    # absx * 2^24 is exact (power-of-two scale), so the magic-number add does a
    # single correct rounding even if the compiler contracts it into an FMA.
    absx = pltpu.bitcast(a, jnp.float32)
    big = jnp.float32(8388608.0)               # 2^23
    q = (absx * jnp.float32(16777216.0) + big) - big
    sub_bits = pltpu.bitcast(q * jnp.float32(5.9604644775390625e-08), jnp.int32)

    # Selects + sign splice entirely in the int32 domain.
    abs_bits = jnp.where(a < jnp.int32(_F16_MIN_NORMAL_BITS), sub_bits, rnd)
    # |x| >= 65520 rounds to +/-inf; this also maps +/-inf to itself and masks
    # the (harmless, two's-complement) wrap of `rnd` for inf/NaN inputs.
    abs_bits = jnp.where(a >= jnp.int32(_F16_OVERFLOW_BITS),
                         jnp.int32(_F32_INF_BITS), abs_bits)
    out_bits = sign | abs_bits
    # NaNs pass straight through with their payload.
    out_bits = jnp.where(a > jnp.int32(_F32_INF_BITS), bits, out_bits)
    return pltpu.bitcast(out_bits, jnp.float32)


def _cast16_native_kernel(x_ref, o_ref):
    """f16 round trip using hardware/Mosaic converts (2 ops/element)."""
    x = x_ref[...].astype(jnp.float32)
    o_ref[...] = x.astype(jnp.float16).astype(jnp.float32).astype(o_ref.dtype)


def _cast16_emul_kernel(x_ref, o_ref):
    """f16 round trip emulated with int32/f32 bit math (fallback path)."""
    x = x_ref[...].astype(jnp.float32)
    o_ref[...] = _fp16_round_trip_f32(x).astype(o_ref.dtype)


@functools.lru_cache(maxsize=None)
def _native_f16_supported():
    """One-time probe: does Mosaic lower f32<->f16 converts with IEEE RNE and
    subnormal-preserving semantics?  If not, use the bit-math emulation.
    (Call outside of jit tracing; cached after the first call.)"""
    try:
        row_tie = [2049.0] * 128            # RNE tie: f16(2049) == 2048
        row_sub = [2.0 ** -15] * 128        # f16 subnormal, must not flush to 0
        probe = jnp.array([row_tie, row_sub] * 4, dtype=jnp.float32)
        want = jnp.array([[2048.0] * 128, row_sub] * 4, dtype=jnp.float32)
        got = pl.pallas_call(
            _cast16_native_kernel,
            out_shape=jax.ShapeDtypeStruct((8, 128), jnp.float32),
        )(probe)
        return bool(jnp.all(got == want))
    except Exception:
        return False


_LANE_CANDIDATES = (1024, 512, 256, 128)
_TARGET_BLOCK_BYTES = 2 * 1024 * 1024       # ~2 MiB input block per grid step


def cast_to_16bit(x):
    """JAX/Pallas equivalent of CastTo16Bit.forward: x.half().to(x.dtype)."""
    orig_shape = x.shape
    orig_dtype = x.dtype

    if orig_dtype == jnp.float16:
        return x                                     # round trip is the identity
    if orig_dtype not in (jnp.float32, jnp.bfloat16):
        # TODO(synk): integer / float64 inputs (accepted by torch .half()) take
        # a pure-JAX path; TPU has no f64 and the kernel is float-only.
        return x.astype(jnp.float16).astype(orig_dtype)

    total = int(x.size)
    if total == 0:
        return x

    # ---- lane-dense 2-D view (zero-copy fast path) --------------------------
    # Any total divisible by 128 avoids jnp.pad and the trailing slice entirely
    # (each would be a full extra HBM pass for this memory-bound op).
    lane = next((c for c in _LANE_CANDIDATES if total % c == 0), None)
    ragged = lane is None
    if ragged:
        lane = 1024
        padded_total = pl.cdiv(total, lane) * lane   # pads <= lane-1 elements
        flat = jnp.pad(x.reshape(-1), (0, padded_total - total))
    else:
        padded_total = total
        flat = x.reshape(-1)                         # free reshape, no copy
    rows = padded_total // lane
    x2d = flat.reshape(rows, lane)

    # ---- dtype-aware row tiling ---------------------------------------------
    itemsize = x.dtype.itemsize
    # <= ~2 MiB per double-buffered input block; bf16 gets 2x the rows of f32.
    vmem_rows = max(8, (_TARGET_BLOCK_BYTES // (lane * itemsize)) // 8 * 8)
    # Keep >= ~4 grid steps when possible so the DMA pipeline has work to
    # overlap and v7x can shard the "parallel" axis over both TensorCores.
    split_rows = max(8, pl.cdiv(pl.cdiv(rows, 4), 8) * 8)
    tile_r = min(vmem_rows, split_rows)
    if rows <= tile_r:
        tile_r = rows                                # tiny input: one full block
    grid = pl.cdiv(rows, tile_r)                     # last block may be partial

    kernel = (_cast16_native_kernel if _native_f16_supported()
              else _cast16_emul_kernel)

    out2d = pl.pallas_call(
        kernel,
        out_shape=jax.ShapeDtypeStruct((rows, lane), orig_dtype),
        grid=(grid,),
        in_specs=[pl.BlockSpec((tile_r, lane), lambda i: (i, 0))],
        out_specs=pl.BlockSpec((tile_r, lane), lambda i: (i, 0)),
        compiler_params=pltpu.CompilerParams(
            dimension_semantics=("parallel",),
            vmem_limit_bytes=32 * 1024 * 1024),
        cost_estimate=pl.CostEstimate(
            flops=16 * rows * lane,
            transcendentals=0,
            bytes_accessed=2 * rows * lane * itemsize),
    )(x2d)

    if ragged:
        return out2d.reshape(-1)[:total].reshape(orig_shape)
    return out2d.reshape(orig_shape)


# ------------------------------ self test ------------------------------------
def _matches(out, ref):
    """Element-wise exact match (NaN vs NaN OK, signed zero respected)."""
    vals = jnp.where(jnp.isnan(ref), jnp.isnan(out), out == ref)
    sign = jnp.isnan(ref) | (jnp.signbit(out) == jnp.signbit(ref))
    return vals & sign


def _check(x):
    out = cast_to_16bit(x)
    jax.block_until_ready(out)
    assert out.shape == x.shape and out.dtype == x.dtype
    # Exact-match either the on-device XLA reference or the host IEEE reference
    # (they agree everywhere except possible platform subnormal quirks).
    ref_xla = x.astype(jnp.float16).astype(x.dtype)
    ref_np = jnp.asarray(
        np.asarray(x, dtype=np.float32).astype(np.float16).astype(np.float32)
    ).astype(x.dtype)
    ok = _matches(out, ref_xla) | _matches(out, ref_np)
    assert bool(jnp.all(ok)), "fp16 round-trip mismatch"
    return out


if __name__ == "__main__":
    key = jax.random.PRNGKey(0)

    # Small 4-D activation tensor (primary example input).
    x = jax.random.normal(key, (2, 4, 16, 16), dtype=jnp.float32) * 10.0
    _check(x)

    # Corner cases; ragged size exercises the pad/slice fallback path.
    corner = jnp.array(
        [0.0, -0.0, 1.0, -1.0, 2049.0, -2049.0, 65504.0, 65519.99, 65520.0,
         -65520.0, 1.0e5, 6.103515625e-05, -6.103515625e-05, 3.0e-05,
         2.9802322387695312e-08, 5.960464477539063e-08, -1.0e-07, 1.0e-40,
         float("inf"), float("-inf"), float("nan"), 0.3333333, 1234.567],
        dtype=jnp.float32)
    _check(corner)

    # Larger input -> multi-step grid on the zero-copy fast path.
    y = jax.random.normal(jax.random.PRNGKey(0), (8, 64, 128), dtype=jnp.float32)
    _check(y)

    print("KERNEL_OK")
</pallas_src>

<mosaic_0001>
module attributes {stable_mosaic.version = 11 : i64} {
  func.func @_cast16_native_kernel(%arg0: memref<8x128xf32, #tpu.memory_space<vmem>>, %arg1: memref<8x128xf32, #tpu.memory_space<vmem>>) attributes {dimension_semantics = [], scalar_prefetch = 0 : i64, scratch_operands = 0 : i64, tpu.core_type = #tpu.core_type<tc>} {
    %c0 = arith.constant 0 : index
    %c0_0 = arith.constant 0 : index
    %0 = vector.load %arg0[%c0, %c0_0] : memref<8x128xf32, #tpu.memory_space<vmem>>, vector<8x128xf32>
    %1 = arith.truncf %0 : vector<8x128xf32> to vector<8x128xf16>
    %2 = arith.extf %1 : vector<8x128xf16> to vector<8x128xf32>
    %c0_1 = arith.constant 0 : index
    %c0_2 = arith.constant 0 : index
    %3 = vector.load %arg1[%c0_1, %c0_2] : memref<8x128xf32, #tpu.memory_space<vmem>>, vector<8x128xf32>
    tpu.vector_store %arg1[%c0_1, %c0_2], %2 {strides = array<i32>} : memref<8x128xf32, #tpu.memory_space<vmem>>, vector<8x128xf32>,
    return
  }
}

module attributes {stable_mosaic.version = 11 : i64} {
  func.func @_cast16_emul_kernel(%arg0: i32, %arg1: memref<2x1024xf32, #tpu.memory_space<vmem>>, %arg2: memref<2x1024xf32, #tpu.memory_space<vmem>>) attributes {dimension_semantics = [#tpu.dimension_semantics<parallel>], iteration_bounds = array<i64: 1>, scalar_prefetch = 0 : i64, scratch_operands = 0 : i64, tpu.core_type = #tpu.core_type<tc>, window_params = [{transform_indices = @transform_0, window_bounds = array<i64: 2, 1024>}, {transform_indices = @transform_1, window_bounds = array<i64: 2, 1024>}]} {
    %c0 = arith.constant 0 : index
    %c0_0 = arith.constant 0 : index
    %0 = vector.load %arg1[%c0, %c0_0] : memref<2x1024xf32, #tpu.memory_space<vmem>>, vector<2x1024xf32>
    %1 = tpu.bitcast %0 : vector<2x1024xf32> -> vector<2x1024xi32>
    %c2147483647_i32 = arith.constant 2147483647 : i32
    %2 = vector.broadcast %c2147483647_i32 : i32 to vector<2x1024xi32>
    %3 = arith.andi %1, %2 : vector<2x1024xi32>
    %4 = arith.xori %1, %3 : vector<2x1024xi32>
    %c13_i32 = arith.constant 13 : i32
    %5 = vector.broadcast %c13_i32 : i32 to vector<2x1024xi32>
    %6 = arith.shrsi %3, %5 : vector<2x1024xi32>
    %c1_i32 = arith.constant 1 : i32
    %7 = vector.broadcast %c1_i32 : i32 to vector<2x1024xi32>
    %8 = arith.andi %6, %7 : vector<2x1024xi32>
    %c4095_i32 = arith.constant 4095 : i32
    %9 = vector.broadcast %c4095_i32 : i32 to vector<2x1024xi32>
    %10 = arith.addi %9, %8 : vector<2x1024xi32>
    %11 = arith.addi %3, %10 : vector<2x1024xi32>
    %c-8192_i32 = arith.constant -8192 : i32
    %12 = vector.broadcast %c-8192_i32 : i32 to vector<2x1024xi32>
    %13 = arith.andi %11, %12 : vector<2x1024xi32>
    %14 = tpu.bitcast %3 : vector<2x1024xi32> -> vector<2x1024xf32>
    %cst = arith.constant 0x4B800000 : f32
    %15 = vector.broadcast %cst : f32 to vector<2x1024xf32>
    %16 = arith.mulf %14, %15 : vector<2x1024xf32>
    %cst_1 = arith.constant 0x4B000000 : f32
    %17 = vector.broadcast %cst_1 : f32 to vector<2x1024xf32>
    %18 = arith.addf %16, %17 : vector<2x1024xf32>
    %cst_2 = arith.constant 0x4B000000 : f32
    %19 = vector.broadcast %cst_2 : f32 to vector<2x1024xf32>
    %20 = arith.subf %18, %19 : vector<2x1024xf32>
    %cst_3 = arith.constant 5.96046448E-8 : f32
    %21 = vector.broadcast %cst_3 : f32 to vector<2x1024xf32>
    %22 = arith.mulf %20, %21 : vector<2x1024xf32>
    %23 = tpu.bitcast %22 : vector<2x1024xf32> -> vector<2x1024xi32>
    %c947912704_i32 = arith.constant 947912704 : i32
    %24 = vector.broadcast %c947912704_i32 : i32 to vector<2x1024xi32>
    %25 = arith.cmpi slt, %3, %24 : vector<2x1024xi32>
    %26 = arith.select %25, %23, %13 : vector<2x1024xi1>, vector<2x1024xi32>
    %c1199566848_i32 = arith.constant 1199566848 : i32
    %27 = vector.broadcast %c1199566848_i32 : i32 to vector<2x1024xi32>
    %28 = arith.cmpi sge, %3, %27 : vector<2x1024xi32>
    %c2139095040_i32 = arith.constant 2139095040 : i32
    %29 = vector.broadcast %c2139095040_i32 : i32 to vector<2x1024xi32>
    %30 = arith.select %28, %29, %26 : vector<2x1024xi1>, vector<2x1024xi32>
    %31 = arith.ori %4, %30 : vector<2x1024xi32>
    %c2139095040_i32_4 = arith.constant 2139095040 : i32
    %32 = vector.broadcast %c2139095040_i32_4 : i32 to vector<2x1024xi32>
    %33 = arith.cmpi sgt, %3, %32 : vector<2x1024xi32>
    %34 = arith.select %33, %1, %31 : vector<2x1024xi1>, vector<2x1024xi32>
    %35 = tpu.bitcast %34 : vector<2x1024xi32> -> vector<2x1024xf32>
    %c0_5 = arith.constant 0 : index
    %c0_6 = arith.constant 0 : index
    %36 = vector.load %arg2[%c0_5, %c0_6] : memref<2x1024xf32, #tpu.memory_space<vmem>>, vector<2x1024xf32>
    tpu.vector_store %arg2[%c0_5, %c0_6], %35 {strides = array<i32>} : memref<2x1024xf32, #tpu.memory_space<vmem>>, vector<2x1024xf32>,
    return
  }
  func.func @transform_0(%arg0: i32) -> (i32, i32) {
    %c0_i32 = arith.constant 0 : i32
    %c0_i32_0 = arith.constant 0 : i32
    return %arg0, %c0_i32 : i32, i32
  }
  func.func @transform_1(%arg0: i32) -> (i32, i32) {
    %c0_i32 = arith.constant 0 : i32
    %c0_i32_0 = arith.constant 0 : i32
    return %arg0, %c0_i32 : i32, i32
  }
}

</mosaic_0001>

<llo_original>
// kernel: tpu_custom_call.1
$region0: #{tpu_custom_call.1}
  #allocation0 [shape = 'u32[]', space=smem, size = 0x4, offset = 0x4, fixed_abs, tag = 'smem constant byte address 0x4 - core index']
  #allocation1 [shape = 'u32[144,128]{1,0:T(1,128)}', space=vmem, size = 0x12000, scoped, tag = 'internal scratch']
  %s0 = inlined_call_operand.hbm [shape: f32[2,1024], index: 0, kind: input, shape index: {}]
  %s1 = inlined_call_operand.hbm [shape: f32[2,1024], index: 1, kind: output, shape index: {}]
  %s2 = sld [smem:[#allocation0]]
  $region18: #{tpu_custom_call.1} parent=0
    _
  %s4 = ssub.s32 1, %s2
  %s5 = scalar_select 0, %s4, %s2
  $region1: #{tpu_custom_call.1} parent=0
    #allocation2 [shape = 'u8[8192]{0}', space=vmem, size = 0x2000, scoped, tag = 'input window, operand 0, single buffered']
    #allocation3 [shape = 's32[1]{0}', space=sflag, size = 0x4, scoped, tag = 'scoped memory for tpu_custom_call.1']
    #allocation4 [shape = 's32[1]{0}', space=sflag, size = 0x4, scoped, tag = 'scoped memory for tpu_custom_call.1']
    #allocation5 [shape = 'u8[8192]{0}', space=vmem, size = 0x2000, scoped, tag = 'output window, operand 0, single buffered']
    %6 = vsyncpa [#allocation3], 0
    %7 = vsyncpa [#allocation4], 0
    // Predicated region
    $region2: #{tpu_custom_call.1} parent=1 // pred_check
      _
    $region3: #{tpu_custom_call.1} parent=1 // pred_check_branch
      %9 = sbr.rel (0) target = $region5
    $region4: #{tpu_custom_call.1} parent=1 // pred_region
      %s11 = ssub.s32 256, 256
      %12 = vsyncadd [#allocation3], %s11
      %s14 = sshll.u32 [#allocation2], 4
      %s15 = int_to_ptr.vmem [resolvable:$true] %s14
      %17 = dma.hbm_to_vmem [thread:$0]  %s0, 256, %s15, [#allocation3]
    $region5: #{tpu_custom_call.1} parent=1 // pred_fallthru
      _
    // Predicated region
    $region6: #{tpu_custom_call.1} parent=1 // pred_check
      _
    $region7: #{tpu_custom_call.1} parent=1 // pred_check_branch
      %19 = sbr.rel (0) target = $region9
    $region8: #{tpu_custom_call.1} parent=1 // pred_region
      %20 = dma.done [#allocation3], 256
    $region9: #{tpu_custom_call.1} parent=1 // pred_fallthru
      _
    %v21 = vld [vmem:[#allocation2] sm:$0xff]
    %v22 = vld [vmem:[#allocation2 + $0x8] sm:$0xff]
    %v25 = vcombine.high %v21, %v21
    %v27 = vunpack.c.l.s4 1983009808
    %v28 = vunpack.c.0.s8 %v27
    %v29 = vlaneseq
    %v30 = vshrl.u32 %v29, 7
    %v31 = vsub.s32 %v28, %v30
    %v32 = vrot.slane %v21, %v31
    %v34 = vunpack.c.l.s4 1983009808
    %v35 = vunpack.c.0.s8 %v34
    %v36 = vlaneseq
    %v37 = vshrl.u32 %v36, 7
    %v38 = vsub.s32 %v35, %v37
    %v39 = vrot.slane %v25, %v38
    %v40 = vcombine.high %v32, %v32
    %v41 = vcombine.high %v39, %v39
    %v42 = vcombine.high %v22, %v22
    %v44 = vunpack.c.l.s4 1983009808
    %v45 = vunpack.c.0.s8 %v44
    %v46 = vlaneseq
    %v47 = vshrl.u32 %v46, 7
    %v48 = vsub.s32 %v45, %v47
    %v49 = vrot.slane %v22, %v48
    %v51 = vunpack.c.l.s4 1983009808
    %v52 = vunpack.c.0.s8 %v51
    %v53 = vlaneseq
    %v54 = vshrl.u32 %v53, 7
    %v55 = vsub.s32 %v52, %v54
    %v56 = vrot.slane %v42, %v55
    %v57 = vcombine.high %v49, %v49
    %v58 = vcombine.high %v56, %v56
    %v59 = vand.u32 %v32, 2147483647
    %v60 = vand.u32 %v40, 2147483647
    %v61 = vand.u32 %v39, 2147483647
    %v62 = vand.u32 %v41, 2147483647
    %v63 = vand.u32 %v49, 2147483647
    %v64 = vand.u32 %v57, 2147483647
    %v65 = vand.u32 %v56, 2147483647
    %v66 = vand.u32 %v58, 2147483647
    %v67 = vxor.u32 %v32, %v59
    %v68 = vxor.u32 %v40, %v60
    %v69 = vxor.u32 %v39, %v61
    %v70 = vxor.u32 %v41, %v62
    %v71 = vxor.u32 %v49, %v63
    %v72 = vxor.u32 %v57, %v64
    %v73 = vxor.u32 %v56, %v65
    %v74 = vxor.u32 %v58, %v66
    %v75 = vshra.s32 %v59, 13
    %v76 = vshra.s32 %v60, 13
    %v77 = vshra.s32 %v61, 13
    %v78 = vshra.s32 %v62, 13
    %v79 = vshra.s32 %v63, 13
    %v80 = vshra.s32 %v64, 13
    %v81 = vshra.s32 %v65, 13
    %v82 = vshra.s32 %v66, 13
    %v83 = vand.u32 %v75, 1
    %v84 = vand.u32 %v76, 1
    %v85 = vand.u32 %v77, 1
    %v86 = vand.u32 %v78, 1
    %v87 = vand.u32 %v79, 1
    %v88 = vand.u32 %v80, 1
    %v89 = vand.u32 %v81, 1
    %v90 = vand.u32 %v82, 1
    %v91 = vadd.s32 %v83, 4095
    %v92 = vadd.s32 %v84, 4095
    %v93 = vadd.s32 %v85, 4095
    %v94 = vadd.s32 %v86, 4095
    %v95 = vadd.s32 %v87, 4095
    %v96 = vadd.s32 %v88, 4095
    %v97 = vadd.s32 %v89, 4095
    %v98 = vadd.s32 %v90, 4095
    %v99 = vadd.s32 %v59, %v91
    %v100 = vadd.s32 %v60, %v92
    %v101 = vadd.s32 %v61, %v93
    %v102 = vadd.s32 %v62, %v94
    %v103 = vadd.s32 %v63, %v95
    %v104 = vadd.s32 %v64, %v96
    %v105 = vadd.s32 %v65, %v97
    %v106 = vadd.s32 %v66, %v98
    %v107 = vand.u32 %v99, 4294959104
    %v108 = vand.u32 %v100, 4294959104
    %v109 = vand.u32 %v101, 4294959104
    %v110 = vand.u32 %v102, 4294959104
    %v111 = vand.u32 %v103, 4294959104
    %v112 = vand.u32 %v104, 4294959104
    %v113 = vand.u32 %v105, 4294959104
    %v114 = vand.u32 %v106, 4294959104
    %v123 = vmul.f32 %v59, 16777216.0
    %v124 = vmul.f32 %v60, 16777216.0
    %v125 = vmul.f32 %v61, 16777216.0
    %v126 = vmul.f32 %v62, 16777216.0
    %v127 = vmul.f32 %v63, 16777216.0
    %v128 = vmul.f32 %v64, 16777216.0
    %v129 = vmul.f32 %v65, 16777216.0
    %v130 = vmul.f32 %v66, 16777216.0
    %v131 = vadd.f32 %v123, 8388608.0
    %v132 = vadd.f32 %v124, 8388608.0
    %v133 = vadd.f32 %v125, 8388608.0
    %v134 = vadd.f32 %v126, 8388608.0
    %v135 = vadd.f32 %v127, 8388608.0
    %v136 = vadd.f32 %v128, 8388608.0
    %v137 = vadd.f32 %v129, 8388608.0
    %v138 = vadd.f32 %v130, 8388608.0
    %v139 = vsub.f32 %v131, 8388608.0
    %v140 = vsub.f32 %v132, 8388608.0
    %v141 = vsub.f32 %v133, 8388608.0
    %v142 = vsub.f32 %v134, 8388608.0
    %v143 = vsub.f32 %v135, 8388608.0
    %v144 = vsub.f32 %v136, 8388608.0
    %v145 = vsub.f32 %v137, 8388608.0
    %v146 = vsub.f32 %v138, 8388608.0
    %v147 = vmul.f32 %v139, 5.9604645e-08
    %v148 = vmul.f32 %v140, 5.9604645e-08
    %v149 = vmul.f32 %v141, 5.9604645e-08
    %v150 = vmul.f32 %v142, 5.9604645e-08
    %v151 = vmul.f32 %v143, 5.9604645e-08
    %v152 = vmul.f32 %v144, 5.9604645e-08
    %v153 = vmul.f32 %v145, 5.9604645e-08
    %v154 = vmul.f32 %v146, 5.9604645e-08
    %vm163 = vcmp.lt.s32.totalorder %v59, 947912704
    %vm164 = vcmp.lt.s32.totalorder %v60, 947912704
    %vm165 = vcmp.lt.s32.totalorder %v61, 947912704
    %vm166 = vcmp.lt.s32.totalorder %v62, 947912704
    %vm167 = vcmp.lt.s32.totalorder %v63, 947912704
    %vm168 = vcmp.lt.s32.totalorder %v64, 947912704
    %vm169 = vcmp.lt.s32.totalorder %v65, 947912704
    %vm170 = vcmp.lt.s32.totalorder %v66, 947912704
    %v171 = vsel %vm163, %v147, %v107
    %v172 = vsel %vm164, %v148, %v108
    %v173 = vsel %vm165, %v149, %v109
    %v174 = vsel %vm166, %v150, %v110
    %v175 = vsel %vm167, %v151, %v111
    %v176 = vsel %vm168, %v152, %v112
    %v177 = vsel %vm169, %v153, %v113
    %v178 = vsel %vm170, %v154, %v114
    %vm179 = vcmp.ge.s32.totalorder %v59, 1199566848
    %vm180 = vcmp.ge.s32.totalorder %v60, 1199566848
    %vm181 = vcmp.ge.s32.totalorder %v61, 1199566848
    %vm182 = vcmp.ge.s32.totalorder %v62, 1199566848
    %vm183 = vcmp.ge.s32.totalorder %v63, 1199566848
    %vm184 = vcmp.ge.s32.totalorder %v64, 1199566848
    %vm185 = vcmp.ge.s32.totalorder %v65, 1199566848
    %vm186 = vcmp.ge.s32.totalorder %v66, 1199566848
    %v187 = vsel %vm179, 2139095040, %v171
    %v188 = vsel %vm180, 2139095040, %v172
    %v189 = vsel %vm181, 2139095040, %v173
    %v190 = vsel %vm182, 2139095040, %v174
    %v191 = vsel %vm183, 2139095040, %v175
    %v192 = vsel %vm184, 2139095040, %v176
    %v193 = vsel %vm185, 2139095040, %v177
    %v194 = vsel %vm186, 2139095040, %v178
    %v195 = vor.u32 %v67, %v187
    %v196 = vor.u32 %v68, %v188
    %v197 = vor.u32 %v69, %v189
    %v198 = vor.u32 %v70, %v190
    %v199 = vor.u32 %v71, %v191
    %v200 = vor.u32 %v72, %v192
    %v201 = vor.u32 %v73, %v193
    %v202 = vor.u32 %v74, %v194
    %vm203 = vcmp.gt.s32.totalorder %v59, 2139095040
    %vm204 = vcmp.gt.s32.totalorder %v60, 2139095040
    %vm205 = vcmp.gt.s32.totalorder %v61, 2139095040
    %vm206 = vcmp.gt.s32.totalorder %v62, 2139095040
    %vm207 = vcmp.gt.s32.totalorder %v63, 2139095040
    %vm208 = vcmp.gt.s32.totalorder %v64, 2139095040
    %vm209 = vcmp.gt.s32.totalorder %v65, 2139095040
    %vm210 = vcmp.gt.s32.totalorder %v66, 2139095040
    %v211 = vsel %vm203, %v32, %v195
    %v212 = vsel %vm204, %v40, %v196
    %v213 = vsel %vm205, %v39, %v197
    %v214 = vsel %vm206, %v41, %v198
    %v215 = vsel %vm207, %v49, %v199
    %v216 = vsel %vm208, %v57, %v200
    %v217 = vsel %vm209, %v56, %v201
    %v218 = vsel %vm210, %v58, %v202
    %v219 = vcombine.low %v211, %v212
    %v220 = vcombine.low %v213, %v214
    %v222 = vunpack.c.l.s4 1983009808
    %v223 = vunpack.c.0.s8 %v222
    %v224 = vlaneseq
    %v225 = vshrl.u32 %v224, 7
    %v226 = vsub.s32 %v223, %v225
    %v227 = vrot.slane %v219, %v226
    %v229 = vunpack.c.l.s4 1983009808
    %v230 = vunpack.c.0.s8 %v229
    %v231 = vlaneseq
    %v232 = vshrl.u32 %v231, 7
    %v233 = vsub.s32 %v230, %v232
    %v234 = vrot.slane %v220, %v233
    %v235 = vcombine.low %v227, %v234
    %v236 = vcombine.low %v215, %v216
    %v237 = vcombine.low %v217, %v218
    %v239 = vunpack.c.l.s4 1983009808
    %v240 = vunpack.c.0.s8 %v239
    %v241 = vlaneseq
    %v242 = vshrl.u32 %v241, 7
    %v243 = vsub.s32 %v240, %v242
    %v244 = vrot.slane %v236, %v243
    %v246 = vunpack.c.l.s4 1983009808
    %v247 = vunpack.c.0.s8 %v246
    %v248 = vlaneseq
    %v249 = vshrl.u32 %v248, 7
    %v250 = vsub.s32 %v247, %v249
    %v251 = vrot.slane %v237, %v250
    %v252 = vcombine.low %v244, %v251
    %255 = vst [vmem:[#allocation5] sm:$0xff] %v235
    %256 = vst [vmem:[#allocation5 + $0x8] sm:$0xff] %v252
    // Predicated region
    $region10: #{tpu_custom_call.1} parent=1 // pred_check
      _
    $region11: #{tpu_custom_call.1} parent=1 // pred_check_branch
      %258 = sbr.rel (0) target = $region13
    $region12: #{tpu_custom_call.1} parent=1 // pred_region
      %s260 = ssub.s32 256, 256
      %261 = vsyncadd [#allocation4], %s260
      %s263 = sshll.u32 [#allocation5], 4
      %s264 = int_to_ptr.vmem [resolvable:$true] %s263
      %266 = dma.vmem_to_hbm [thread:$0]  %s264, 256, %s1, [#allocation4]
    $region13: #{tpu_custom_call.1} parent=1 // pred_fallthru
      _
    // Predicated region
    $region14: #{tpu_custom_call.1} parent=1 // pred_check
      _
    $region15: #{tpu_custom_call.1} parent=1 // pred_check_branch
      %268 = sbr.rel (0) target = $region17
    $region16: #{tpu_custom_call.1} parent=1 // pred_region
      %269 = dma.done [#allocation4], 256
    $region17: #{tpu_custom_call.1} parent=1 // pred_fallthru
      _
    %270 = vsyncpa [#allocation3], 1
    %271 = vsyncpa [#allocation4], 1

</llo_original>
